<compile_context>
chip_gen: v6e
topology: v6e:2x2x1
jax: 0.10.0
libtpu: 0.0.40
codegen_flags: <defaults>
</compile_context>

<pallas_src>
import functools

import jax
import jax.numpy as jnp
from jax.experimental import pallas as pl
from jax.experimental.pallas import tpu as pltpu


def _sdpa_body(q, kt, v, mask, ctx_ref, attn_ref, *, scale, fold_scale):
    # q: (tq, D), kt: (D, Lk), v: (Lk, Dv), mask: None | (tq, Lk) | (1, Lk) int8.
    if scale is not None and fold_scale:
        # Exact for f32 Q: tq*D multiplies instead of tq*Lk.
        q = q * jnp.asarray(scale, dtype=q.dtype)

    # QK^T as a plain NN matmul against the pre-transposed K (lane-dense along Lk).
    scores = jnp.dot(q, kt, preferred_element_type=jnp.float32)  # (tq, Lk) f32

    if scale is not None and not fold_scale:
        # Low-precision Q: scale the f32 logits, matching the reference ordering.
        scores = scores * jnp.float32(scale)

    if mask is not None:
        # masked_fill(attn_mask, -1e32); (1, Lk) key-padding masks broadcast over rows.
        scores = jnp.where(mask != 0, jnp.float32(-1e32), scores)

    # Numerically-stable softmax over the last axis (stats in f32).
    m = jnp.max(scores, axis=-1, keepdims=True)
    e = jnp.exp(scores - m)
    denom = jnp.sum(e, axis=-1, keepdims=True)

    # Start the second MXU matmul on the unnormalized probabilities so it overlaps the
    # VPU normalization; normalize the small (tq, Dv) result afterwards.
    ctx_un = jnp.dot(e.astype(v.dtype), v, preferred_element_type=jnp.float32)

    recip = 1.0 / denom  # exact: returned attn matches jax.nn.softmax.
    ctx_ref[...] = (ctx_un * recip).astype(ctx_ref.dtype)
    if attn_ref is not None:
        attn_ref[...] = (e * recip).astype(attn_ref.dtype)


def _kernel(q_ref, kt_ref, v_ref, *rest, has_mask, has_attn, scale, fold_scale):
    idx = 0
    mask = None
    if has_mask:
        mask = rest[idx][...]
        idx += 1
    ctx_ref = rest[idx]
    idx += 1
    attn_ref = rest[idx] if has_attn else None
    _sdpa_body(q_ref[...], kt_ref[...], v_ref[...], mask, ctx_ref, attn_ref,
               scale=scale, fold_scale=fold_scale)


def _generation_aware_vmem_limit():
    """~3/4 of physical VMEM (48 MiB on v7x, 96 MiB on v5e/v6e); None -> compiler default."""
    try:
        info = pltpu.get_tpu_info()
        cap = int(getattr(info, "vmem_capacity_bytes", 0))
        if cap > 0:
            return max(32 * 1024 * 1024, min((cap * 3) // 4, 100 * 1024 * 1024))
    except Exception:
        pass  # no TPU / interpret mode / query unsupported
    return None


def scaled_dot_product_attention(query, key, value, scale=None, attn_mask=None,
                                 *, block_q=128, return_attn=True,
                                 attn_dtype=jnp.float32):
    """query (B, Lq, D), key (B, Lk, D), value (B, Lk, Dv) -> (context, attn).

    attn_mask may be None, dense (B, Lq, Lk), broadcast (B, 1, Lk), or (B, Lk).
    If return_attn is False the attention-probability output is not produced at all
    and None is returned in its place.
    """
    B, Lq, D = query.shape
    Bk, Lk, Dk = key.shape
    Bv, Lkv, Dv = value.shape
    assert Bk == B and Bv == B and Dk == D and Lkv == Lk

    # Q tile: full Lq for short sequences, else block_q rows.
    tq = Lq if Lq <= block_q else block_q
    grid = (B, pl.cdiv(Lq, tq))

    # One-time K relayout outside the kernel: QK^T becomes a plain NN matmul.
    key_nt = jnp.swapaxes(key, 1, 2)  # (B, D, Lk)

    in_specs = [
        pl.BlockSpec((None, tq, D), lambda b, i: (b, i, 0)),    # Q tile
        pl.BlockSpec((None, D, Lk), lambda b, i: (b, 0, 0)),    # K^T, per batch
        pl.BlockSpec((None, Lk, Dv), lambda b, i: (b, 0, 0)),   # V, per batch
    ]
    inputs = [query, key_nt, value]

    has_mask = attn_mask is not None
    if has_mask:
        if attn_mask.ndim == 2:                                   # (B, Lk) key padding
            mask = attn_mask.reshape(B, 1, Lk)
        elif attn_mask.ndim == 3 and attn_mask.shape[1] == 1:     # (B, 1, Lk)
            mask = attn_mask
        else:                                                     # dense (B, Lq, Lk)
            assert attn_mask.shape == (B, Lq, Lk)
            mask = attn_mask
        mask = mask.astype(jnp.int8)                              # 1 byte/elem stream
        if mask.shape[1] == 1:
            in_specs.append(pl.BlockSpec((None, 1, Lk), lambda b, i: (b, 0, 0)))
        else:
            in_specs.append(pl.BlockSpec((None, tq, Lk), lambda b, i: (b, i, 0)))
        inputs.append(mask)

    out_shape = [jax.ShapeDtypeStruct((B, Lq, Dv), query.dtype)]
    out_specs = [pl.BlockSpec((None, tq, Dv), lambda b, i: (b, i, 0))]
    if return_attn:
        out_shape.append(jax.ShapeDtypeStruct((B, Lq, Lk), attn_dtype))
        out_specs.append(pl.BlockSpec((None, tq, Lk), lambda b, i: (b, i, 0)))

    fold_scale = (scale is not None) and (query.dtype == jnp.float32)
    kernel = functools.partial(
        _kernel, has_mask=has_mask, has_attn=return_attn,
        scale=None if scale is None else float(scale), fold_scale=fold_scale)

    compiler_params = pltpu.CompilerParams(
        dimension_semantics=("parallel", "parallel"),
        vmem_limit_bytes=_generation_aware_vmem_limit(),
    )

    outs = pl.pallas_call(
        kernel,
        out_shape=tuple(out_shape),
        grid_spec=pltpu.PrefetchScalarGridSpec(
            num_scalar_prefetch=0,
            grid=grid,
            in_specs=in_specs,
            out_specs=tuple(out_specs),
        ),
        compiler_params=compiler_params,
    )(*inputs)

    if return_attn:
        ctx, attn = outs
        return ctx, attn
    ctx = outs[0] if isinstance(outs, (tuple, list)) else outs
    return ctx, None


def _reference(query, key, value, scale=None, attn_mask=None):
    attn = jnp.einsum("bqd,bkd->bqk", query, key)
    if scale is not None:
        attn = attn * scale
    if attn_mask is not None:
        if attn_mask.ndim == 2:
            attn_mask = attn_mask[:, None, :]
        attn = jnp.where(attn_mask, -1e32, attn)
    attn = jax.nn.softmax(attn, axis=2)
    context = jnp.einsum("bqk,bkv->bqv", attn, value)
    return context, attn


if __name__ == "__main__":
    # Keep both the reference einsums and the in-kernel dots at full f32 accuracy so the
    # comparison is meaningful on the MXU (f32 dots otherwise may use reduced precision).
    jax.config.update("jax_default_matmul_precision", "highest")

    B, Lq, Lk, D, Dv = 2, 8, 8, 32, 32
    root = jax.random.PRNGKey(0)
    k1, k2, k3, k4, k5 = jax.random.split(root, 5)

    q_in = jax.random.normal(k1, (B, Lq, D), dtype=jnp.float32)
    k_in = jax.random.normal(k2, (B, Lk, D), dtype=jnp.float32)
    v_in = jax.random.normal(k3, (B, Lk, Dv), dtype=jnp.float32)
    dense_mask = jax.random.bernoulli(k4, p=0.2, shape=(B, Lq, Lk))
    key_mask = jax.random.bernoulli(k5, p=0.2, shape=(B, Lk))
    scale = 1.0 / (D ** 0.5)

    tol = dict(atol=2e-3, rtol=2e-3)

    # 1) Dense (B, Lq, Lk) mask path.
    ctx, attn = scaled_dot_product_attention(q_in, k_in, v_in, scale=scale,
                                             attn_mask=dense_mask)
    jax.block_until_ready(ctx)
    jax.block_until_ready(attn)
    ctx_r, attn_r = _reference(q_in, k_in, v_in, scale=scale, attn_mask=dense_mask)
    assert jnp.allclose(ctx, ctx_r, **tol), "dense-mask context mismatch"
    assert jnp.allclose(attn, attn_r, **tol), "dense-mask attn mismatch"

    # 2) Broadcastable (B, Lk) key-padding mask (single mask row DMA'd per batch).
    ctx2, attn2 = scaled_dot_product_attention(q_in, k_in, v_in, scale=scale,
                                               attn_mask=key_mask)
    jax.block_until_ready(ctx2)
    ctx2_r, attn2_r = _reference(q_in, k_in, v_in, scale=scale, attn_mask=key_mask)
    assert jnp.allclose(ctx2, ctx2_r, **tol), "key-mask context mismatch"
    assert jnp.allclose(attn2, attn2_r, **tol), "key-mask attn mismatch"

    # 3) No mask, context-only fast path (no (B, Lq, Lk) attn writeback at all).
    ctx3, attn3 = scaled_dot_product_attention(q_in, k_in, v_in, scale=scale,
                                               return_attn=False)
    jax.block_until_ready(ctx3)
    assert attn3 is None
    ctx3_r, _ = _reference(q_in, k_in, v_in, scale=scale)
    assert jnp.allclose(ctx3, ctx3_r, **tol), "no-mask context mismatch"

    print("KERNEL_OK")
</pallas_src>

<mosaic_0001>
module attributes {stable_mosaic.version = 11 : i64} {
  func.func @_kernel(%arg0: i32, %arg1: i32, %arg2: memref<1x8x32xf32, #tpu.memory_space<vmem>>, %arg3: memref<1x32x8xf32, #tpu.memory_space<vmem>>, %arg4: memref<1x8x32xf32, #tpu.memory_space<vmem>>, %arg5: memref<1x8x8xi8, #tpu.memory_space<vmem>>, %arg6: memref<1x8x32xf32, #tpu.memory_space<vmem>>, %arg7: memref<1x8x8xf32, #tpu.memory_space<vmem>>) attributes {dimension_semantics = [#tpu.dimension_semantics<parallel>, #tpu.dimension_semantics<parallel>], iteration_bounds = array<i64: 2, 1>, scalar_prefetch = 0 : i64, scratch_operands = 0 : i64, tpu.core_type = #tpu.core_type<tc>, window_params = [{transform_indices = @transform_0, window_bounds = array<i64: 1, 8, 32>}, {transform_indices = @transform_1, window_bounds = array<i64: 1, 32, 8>}, {transform_indices = @transform_2, window_bounds = array<i64: 1, 8, 32>}, {transform_indices = @transform_3, window_bounds = array<i64: 1, 8, 8>}, {transform_indices = @transform_4, window_bounds = array<i64: 1, 8, 32>}, {transform_indices = @transform_5, window_bounds = array<i64: 1, 8, 8>}]} {
    %c0 = arith.constant 0 : index
    %c0_0 = arith.constant 0 : index
    %c0_1 = arith.constant 0 : index
    %0 = vector.load %arg5[%c0, %c0_0, %c0_1] : memref<1x8x8xi8, #tpu.memory_space<vmem>>, vector<1x8x8xi8>
    %1 = vector.shape_cast %0 : vector<1x8x8xi8> to vector<8x8xi8>
    %c0_2 = arith.constant 0 : index
    %c0_3 = arith.constant 0 : index
    %c0_4 = arith.constant 0 : index
    %2 = vector.load %arg2[%c0_2, %c0_3, %c0_4] : memref<1x8x32xf32, #tpu.memory_space<vmem>>, vector<1x8x32xf32>
    %3 = vector.shape_cast %2 : vector<1x8x32xf32> to vector<8x32xf32>
    %c0_5 = arith.constant 0 : index
    %c0_6 = arith.constant 0 : index
    %c0_7 = arith.constant 0 : index
    %4 = vector.load %arg3[%c0_5, %c0_6, %c0_7] : memref<1x32x8xf32, #tpu.memory_space<vmem>>, vector<1x32x8xf32>
    %5 = vector.shape_cast %4 : vector<1x32x8xf32> to vector<32x8xf32>
    %c0_8 = arith.constant 0 : index
    %c0_9 = arith.constant 0 : index
    %c0_10 = arith.constant 0 : index
    %6 = vector.load %arg4[%c0_8, %c0_9, %c0_10] : memref<1x8x32xf32, #tpu.memory_space<vmem>>, vector<1x8x32xf32>
    %7 = vector.shape_cast %6 : vector<1x8x32xf32> to vector<8x32xf32>
    %cst = arith.constant 0.176776692 : f32
    %8 = vector.broadcast %cst : f32 to vector<8x32xf32>
    %9 = arith.mulf %3, %8 : vector<8x32xf32>
    %cst_11 = arith.constant dense<0.000000e+00> : vector<8x8xf32>
    %10 = tpu.matmul %9, %5, %cst_11 {dimension_numbers = #tpu.dot_dimension_numbers<[1], [0], [0], [1], [0, 0, 1, 1], [], []>, precision = #tpu.contract_precision<fp32>} : vector<8x32xf32>, vector<32x8xf32>, vector<8x8xf32> -> vector<8x8xf32>
    %c0_i8 = arith.constant 0 : i8
    %11 = vector.broadcast %c0_i8 : i8 to vector<8x8xi8>
    %12 = arith.cmpi ne, %1, %11 : vector<8x8xi8>
    %cst_12 = arith.constant -1.000000e+32 : f32
    %13 = vector.broadcast %cst_12 : f32 to vector<8x8xf32>
    %14 = arith.select %12, %13, %10 : vector<8x8xi1>, vector<8x8xf32>
    %cst_13 = arith.constant dense<0xFF800000> : vector<8xf32>
    %15 = vector.multi_reduction <maximumf>, %14, %cst_13 [1] : vector<8x8xf32> to vector<8xf32>
    %16 = vector.shape_cast %15 : vector<8xf32> to vector<8x1xf32>
    %17 = vector.broadcast %16 : vector<8x1xf32> to vector<8x8xf32>
    %18 = arith.subf %14, %17 : vector<8x8xf32>
    %19 = math.exp %18 : vector<8x8xf32>
    %cst_14 = arith.constant dense<0.000000e+00> : vector<8xf32>
    %20 = vector.multi_reduction <add>, %19, %cst_14 [1] : vector<8x8xf32> to vector<8xf32>
    %21 = vector.shape_cast %20 : vector<8xf32> to vector<8x1xf32>
    %cst_15 = arith.constant dense<0.000000e+00> : vector<8x32xf32>
    %22 = tpu.matmul %19, %7, %cst_15 {dimension_numbers = #tpu.dot_dimension_numbers<[1], [0], [0], [1], [0, 0, 1, 1], [], []>, precision = #tpu.contract_precision<fp32>} : vector<8x8xf32>, vector<8x32xf32>, vector<8x32xf32> -> vector<8x32xf32>
    %cst_16 = arith.constant 1.000000e+00 : f32
    %23 = vector.broadcast %cst_16 : f32 to vector<8x1xf32>
    %24 = arith.divf %23, %21 : vector<8x1xf32>
    %25 = vector.broadcast %24 : vector<8x1xf32> to vector<8x32xf32>
    %26 = arith.mulf %22, %25 : vector<8x32xf32>
    %c0_17 = arith.constant 0 : index
    %c0_18 = arith.constant 0 : index
    %c0_19 = arith.constant 0 : index
    %27 = vector.load %arg6[%c0_17, %c0_18, %c0_19] : memref<1x8x32xf32, #tpu.memory_space<vmem>>, vector<1x8x32xf32>
    %28 = vector.shape_cast %27 : vector<1x8x32xf32> to vector<8x32xf32>
    %29 = vector.shape_cast %26 : vector<8x32xf32> to vector<1x8x32xf32>
    tpu.vector_store %arg6[%c0_17, %c0_18, %c0_19], %29 {strides = array<i32>} : memref<1x8x32xf32, #tpu.memory_space<vmem>>, vector<1x8x32xf32>,
    %30 = vector.broadcast %24 : vector<8x1xf32> to vector<8x8xf32>
    %31 = arith.mulf %19, %30 : vector<8x8xf32>
    %c0_20 = arith.constant 0 : index
    %c0_21 = arith.constant 0 : index
    %c0_22 = arith.constant 0 : index
    %32 = vector.load %arg7[%c0_20, %c0_21, %c0_22] : memref<1x8x8xf32, #tpu.memory_space<vmem>>, vector<1x8x8xf32>
    %33 = vector.shape_cast %32 : vector<1x8x8xf32> to vector<8x8xf32>
    %34 = vector.shape_cast %31 : vector<8x8xf32> to vector<1x8x8xf32>
    tpu.vector_store %arg7[%c0_20, %c0_21, %c0_22], %34 {strides = array<i32>} : memref<1x8x8xf32, #tpu.memory_space<vmem>>, vector<1x8x8xf32>,
    return
  }
  func.func @transform_0(%arg0: i32, %arg1: i32) -> (i32, i32, i32) {
    %c0_i32 = arith.constant 0 : i32
    %c0_i32_0 = arith.constant 0 : i32
    return %arg0, %arg1, %c0_i32 : i32, i32, i32
  }
  func.func @transform_1(%arg0: i32, %arg1: i32) -> (i32, i32, i32) {
    %c0_i32 = arith.constant 0 : i32
    %c0_i32_0 = arith.constant 0 : i32
    %c0_i32_1 = arith.constant 0 : i32
    return %arg0, %c0_i32, %c0_i32_0 : i32, i32, i32
  }
  func.func @transform_2(%arg0: i32, %arg1: i32) -> (i32, i32, i32) {
    %c0_i32 = arith.constant 0 : i32
    %c0_i32_0 = arith.constant 0 : i32
    %c0_i32_1 = arith.constant 0 : i32
    return %arg0, %c0_i32, %c0_i32_0 : i32, i32, i32
  }
  func.func @transform_3(%arg0: i32, %arg1: i32) -> (i32, i32, i32) {
    %c0_i32 = arith.constant 0 : i32
    %c0_i32_0 = arith.constant 0 : i32
    return %arg0, %arg1, %c0_i32 : i32, i32, i32
  }
  func.func @transform_4(%arg0: i32, %arg1: i32) -> (i32, i32, i32) {
    %c0_i32 = arith.constant 0 : i32
    %c0_i32_0 = arith.constant 0 : i32
    return %arg0, %arg1, %c0_i32 : i32, i32, i32
  }
  func.func @transform_5(%arg0: i32, %arg1: i32) -> (i32, i32, i32) {
    %c0_i32 = arith.constant 0 : i32
    %c0_i32_0 = arith.constant 0 : i32
    return %arg0, %arg1, %c0_i32 : i32, i32, i32
  }
}

</mosaic_0001>

<llo_original>
// kernel: tpu_custom_call.1
$region0: #{tpu_custom_call.1}
  #allocation0 [shape = 'u32[]', space=smem, size = 0x4, offset = 0x4, fixed_abs, tag = 'smem constant byte address 0x4 - core index']
  #allocation1 [shape = 'u32[144,128]{1,0:T(1,128)}', space=vmem, size = 0x12000, scoped, tag = 'internal scratch']
  %s0 = inlined_call_operand.vmem [shape: f32[2,8,32], index: 0, kind: input, shape index: {}]
  %s1 = inlined_call_operand.vmem [shape: f32[2,32,8], index: 1, kind: input, shape index: {}]
  %s2 = inlined_call_operand.vmem [shape: f32[2,8,32], index: 2, kind: input, shape index: {}]
  %s3 = inlined_call_operand.vmem [shape: s8[2,8,8], index: 3, kind: input, shape index: {}]
  %s4 = inlined_call_operand.hbm [shape: f32[2,8,32], index: 4, kind: output, shape index: {0}]
  %s5 = inlined_call_operand.hbm [shape: f32[2,8,8], index: 5, kind: output, shape index: {1}]
  %6 = xla_tuple %s4, %s5
  %s7 = sld [smem:[#allocation0]]
  $region57: #{tpu_custom_call.1} parent=0
    _
  %s9 = ssub.s32 1, %s7
  %s10 = scalar_select 0, %s9, %s7
  $region1: #{tpu_custom_call.1} parent=0
    #allocation2 [shape = 'u8[8192]{0}', space=vmem, size = 0x2000, scoped, tag = 'output window, operand 0']
    #allocation3 [shape = 's32[2]{0}', space=sflag, size = 0x8, scoped, tag = 'scoped memory for tpu_custom_call.1']
    #allocation4 [shape = 'u8[8192]{0}', space=vmem, size = 0x2000, scoped, tag = 'output window, operand 1']
    #allocation5 [shape = 's32[2]{0}', space=sflag, size = 0x8, scoped, tag = 'scoped memory for tpu_custom_call.1']
    %11 = vsyncpa [#allocation3], 0
    %s12 = scalar_lea.sflag [#allocation3], 1
    %13 = vsyncpa %s12, 0
    %14 = vsyncpa [#allocation5], 0
    %s15 = scalar_lea.sflag [#allocation5], 1
    %16 = vsyncpa %s15, 0
    loop: start=0, step=1, limit=4
    $region2: #{tpu_custom_call.1} parent=1 // loop_pre_header
      _
    $region3: #{tpu_custom_call.1} parent=1 // loop_header
      %s18 = sphi 0, %s22
      %p19 = scmp.ge.s32.totalorder %s18, 4
      %s25 = sphi 0, %s37
      %s26 = sphi 0, %s33
      %s27 = sphi 0, %s25
      %s28 = sphi 0, %s26
      %s29 = sphi 0, %s27
      %s30 = sphi 0, %s28
      %s42 = sphi 0, %s44
      %s45 = sphi 0, %s42
      %s46 = sphi 0, %s45
      %s62 = sphi 0, %s46
      %s68 = sphi 0, %s70
      %s71 = sphi 0, %s68
      %s72 = sphi 0, %s71
      %s88 = sphi 0, %s72
      %s94 = sphi 0, %s96
      %s97 = sphi 0, %s94
      %s98 = sphi 0, %s97
      %s114 = sphi 0, %s98
      %s122 = sphi 0, %s124
      %s125 = sphi 0, %s122
      %s126 = sphi 0, %s125
      %s142 = sphi 0, %s126
      %s150 = sphi 0, %s152
      %s153 = sphi 0, %s150
      %s154 = sphi 0, %s153
      %s170 = sphi 0, %s154
      %s178 = sphi 0, %s180
      %s181 = sphi 0, %s178
      %s182 = sphi 0, %s181
      %s198 = sphi 0, %s182
    $region4: #{tpu_custom_call.1} parent=1 // loop_header_branch
      %21 = sbr.rel (%p19) target = $region8
    $region5: #{tpu_custom_call.1} parent=1 // loop_body
      %s23 = ssub.s32 %s18, 1
      %s24 = ssub.s32 %s18, 2
      %s31 = sadd.s32 1, %s26
      %p32 = scmp.ge.s32.totalorder %s31, 1
      %s33 = scalar_select %p32, 0, %s31
      %s34 = sadd.s32 1, %s25
      %s35 = scalar_select %p32, %s34, %s25
      %p36 = scmp.ge.s32.totalorder %s35, 2
      %s37 = scalar_select %p36, 0, %s35
      %s38 = ssub.s32 %s25, %s37
      %s39 = ssub.s32 %s26, %s33
      %s40 = sor.u32 %s38, %s39
      %p41 = scmp.eq.s32.totalorder %s40, 0
      %s43 = sadd.s32 %s42, 1
      %s44 = scalar_select %p41, %s42, %s43
      %p47 = pneg %p41
      %p48 = scmp.eq.s32.totalorder %s18, 1
      %p49 = por %p47, %p48
      %p50 = scmp.ne.s32.totalorder %s42, %s45
      %p51 = scmp.eq.s32.totalorder %s18, 0
      %p52 = por %p50, %p51
      %p53 = scmp.ne.s32.totalorder %s42, %s45
      %p54 = scmp.eq.s32.totalorder %s23, 1
      %p55 = por %p53, %p54
      %p56 = scmp.ne.s32.totalorder %s45, %s46
      %p57 = scmp.eq.s32.totalorder %s23, 0
      %p58 = por %p56, %p57
      %p59 = scmp.ne.s32.totalorder %s45, %s46
      %p60 = scmp.eq.s32.totalorder %s24, 1
      %p61 = por %p59, %p60
      %p63 = scmp.ne.s32.totalorder %s46, %s62
      %p64 = scmp.eq.s32.totalorder %s24, 0
      %p65 = por %p63, %p64
      %s66 = ssub.s32 %s25, %s37
      %p67 = scmp.eq.s32.totalorder %s66, 0
      %s69 = sadd.s32 %s68, 1
      %s70 = scalar_select %p67, %s68, %s69
      %p73 = pneg %p67
      %p74 = scmp.eq.s32.totalorder %s18, 1
      %p75 = por %p73, %p74
      %p76 = scmp.ne.s32.totalorder %s68, %s71
      %p77 = scmp.eq.s32.totalorder %s18, 0
      %p78 = por %p76, %p77
      %p79 = scmp.ne.s32.totalorder %s68, %s71
      %p80 = scmp.eq.s32.totalorder %s23, 1
      %p81 = por %p79, %p80
      %p82 = scmp.ne.s32.totalorder %s71, %s72
      %p83 = scmp.eq.s32.totalorder %s23, 0
      %p84 = por %p82, %p83
      %p85 = scmp.ne.s32.totalorder %s71, %s72
      %p86 = scmp.eq.s32.totalorder %s24, 1
      %p87 = por %p85, %p86
      %p89 = scmp.ne.s32.totalorder %s72, %s88
      %p90 = scmp.eq.s32.totalorder %s24, 0
      %p91 = por %p89, %p90
      %s92 = ssub.s32 %s25, %s37
      %p93 = scmp.eq.s32.totalorder %s92, 0
      %s95 = sadd.s32 %s94, 1
      %s96 = scalar_select %p93, %s94, %s95
      %p99 = pneg %p93
      %p100 = scmp.eq.s32.totalorder %s18, 1
      %p101 = por %p99, %p100
      %p102 = scmp.ne.s32.totalorder %s94, %s97
      %p103 = scmp.eq.s32.totalorder %s18, 0
      %p104 = por %p102, %p103
      %p105 = scmp.ne.s32.totalorder %s94, %s97
      %p106 = scmp.eq.s32.totalorder %s23, 1
      %p107 = por %p105, %p106
      %p108 = scmp.ne.s32.totalorder %s97, %s98
      %p109 = scmp.eq.s32.totalorder %s23, 0
      %p110 = por %p108, %p109
      %p111 = scmp.ne.s32.totalorder %s97, %s98
      %p112 = scmp.eq.s32.totalorder %s24, 1
      %p113 = por %p111, %p112
      %p115 = scmp.ne.s32.totalorder %s98, %s114
      %p116 = scmp.eq.s32.totalorder %s24, 0
      %p117 = por %p115, %p116
      %s118 = ssub.s32 %s25, %s37
      %s119 = ssub.s32 %s26, %s33
      %s120 = sor.u32 %s118, %s119
      %p121 = scmp.eq.s32.totalorder %s120, 0
      %s123 = sadd.s32 %s122, 1
      %s124 = scalar_select %p121, %s122, %s123
      %p127 = pneg %p121
      %p128 = scmp.eq.s32.totalorder %s18, 1
      %p129 = por %p127, %p128
      %p130 = scmp.ne.s32.totalorder %s122, %s125
      %p131 = scmp.eq.s32.totalorder %s18, 0
      %p132 = por %p130, %p131
      %p133 = scmp.ne.s32.totalorder %s122, %s125
      %p134 = scmp.eq.s32.totalorder %s23, 1
      %p135 = por %p133, %p134
      %p136 = scmp.ne.s32.totalorder %s125, %s126
      %p137 = scmp.eq.s32.totalorder %s23, 0
      %p138 = por %p136, %p137
      %p139 = scmp.ne.s32.totalorder %s125, %s126
      %p140 = scmp.eq.s32.totalorder %s24, 1
      %p141 = por %p139, %p140
      %p143 = scmp.ne.s32.totalorder %s126, %s142
      %p144 = scmp.eq.s32.totalorder %s24, 0
      %p145 = por %p143, %p144
      %s146 = ssub.s32 %s25, %s37
      %s147 = ssub.s32 %s26, %s33
      %s148 = sor.u32 %s146, %s147
      %p149 = scmp.eq.s32.totalorder %s148, 0
      %s151 = sadd.s32 %s150, 1
      %s152 = scalar_select %p149, %s150, %s151
      %p155 = pneg %p149
      %p156 = scmp.eq.s32.totalorder %s18, 1
      %p157 = por %p155, %p156
      %p158 = scmp.ne.s32.totalorder %s150, %s153
      %p159 = scmp.eq.s32.totalorder %s18, 0
      %p160 = por %p158, %p159
      %p161 = scmp.ne.s32.totalorder %s150, %s153
      %p162 = scmp.eq.s32.totalorder %s23, 1
      %p163 = por %p161, %p162
      %p164 = scmp.ne.s32.totalorder %s153, %s154
      %p165 = scmp.eq.s32.totalorder %s23, 0
      %p166 = por %p164, %p165
      %p167 = scmp.ne.s32.totalorder %s153, %s154
      %p168 = scmp.eq.s32.totalorder %s24, 1
      %p169 = por %p167, %p168
      %p171 = scmp.ne.s32.totalorder %s154, %s170
      %p172 = scmp.eq.s32.totalorder %s24, 0
      %p173 = por %p171, %p172
      %s174 = ssub.s32 %s25, %s37
      %s175 = ssub.s32 %s26, %s33
      %s176 = sor.u32 %s174, %s175
      %p177 = scmp.eq.s32.totalorder %s176, 0
      %s179 = sadd.s32 %s178, 1
      %s180 = scalar_select %p177, %s178, %s179
      %p183 = pneg %p177
      %p184 = scmp.eq.s32.totalorder %s18, 1
      %p185 = por %p183, %p184
      %p186 = scmp.ne.s32.totalorder %s178, %s181
      %p187 = scmp.eq.s32.totalorder %s18, 0
      %p188 = por %p186, %p187
      %p189 = scmp.ne.s32.totalorder %s178, %s181
      %p190 = scmp.eq.s32.totalorder %s23, 1
      %p191 = por %p189, %p190
      %p192 = scmp.ne.s32.totalorder %s181, %s182
      %p193 = scmp.eq.s32.totalorder %s23, 0
      %p194 = por %p192, %p193
      %p195 = scmp.ne.s32.totalorder %s181, %s182
      %p196 = scmp.eq.s32.totalorder %s24, 1
      %p197 = por %p195, %p196
      %p199 = scmp.ne.s32.totalorder %s182, %s198
      %p200 = scmp.eq.s32.totalorder %s24, 0
      %p201 = por %p199, %p200
      %p202 = scmp.le.s32.totalorder 1, %s18
      %p203 = scmp.lt.s32.totalorder %s18, 3
      %p204 = pnand %p202, %p203
      %p205 = pneg %p204
      // Predicated region
      $region9: #{tpu_custom_call.1} parent=5 // pred_check
        _
      $region10: #{tpu_custom_call.1} parent=5 // pred_check_branch
        %207 = sbr.rel (%p204) target = $region12
      $region11: #{tpu_custom_call.1} parent=5 // pred_region
        %s208 = ssub.s32 %s18, 1
      $region12: #{tpu_custom_call.1} parent=5 // pred_fallthru
        _
      %p209 = scmp.lt.s32.totalorder %s18, 2
      // Predicated region
      $region13: #{tpu_custom_call.1} parent=5 // pred_check
        %p210 = pneg %p209
      $region14: #{tpu_custom_call.1} parent=5 // pred_check_branch
        %212 = sbr.rel (%p210) target = $region16
      $region15: #{tpu_custom_call.1} parent=5 // pred_region
        // Predicated region
        $region17: #{tpu_custom_call.1} parent=15 // pred_check
          %p213 = pneg %p52
        $region18: #{tpu_custom_call.1} parent=15 // pred_check_branch
          %215 = sbr.rel (%p213) target = $region20
        $region19: #{tpu_custom_call.1} parent=15 // pred_region
          %p216 = scmp.lt.s32.totalorder %s25, 1
          %s217 = scalar_select %p216, %s25, 1
          %p218 = scmp.lt.s32.totalorder %s26, 0
          %s219 = scalar_select %p218, %s26, 0
          %s220 = sadd.s32 %s219, %s217
          %s221 = smul.addr %s220, 8
          %s222 = scalar_lea.vmem %s0, %s221
        $region20: #{tpu_custom_call.1} parent=15 // pred_fallthru
          _
        // Predicated region
        $region21: #{tpu_custom_call.1} parent=15 // pred_check
          %p223 = pneg %p78
        $region22: #{tpu_custom_call.1} parent=15 // pred_check_branch
          %225 = sbr.rel (%p223) target = $region24
        $region23: #{tpu_custom_call.1} parent=15 // pred_region
          %p226 = scmp.lt.s32.totalorder %s25, 1
          %s227 = scalar_select %p226, %s25, 1
          %s228 = smul.addr %s227, 4
          %s229 = smul.addr %s228, 8
          %s230 = scalar_lea.vmem %s1, %s229
        $region24: #{tpu_custom_call.1} parent=15 // pred_fallthru
          _
        // Predicated region
        $region25: #{tpu_custom_call.1} parent=15 // pred_check
          %p231 = pneg %p104
        $region26: #{tpu_custom_call.1} parent=15 // pred_check_branch
          %233 = sbr.rel (%p231) target = $region28
        $region27: #{tpu_custom_call.1} parent=15 // pred_region
          %p234 = scmp.lt.s32.totalorder %s25, 1
          %s235 = scalar_select %p234, %s25, 1
          %s236 = smul.addr %s235, 8
          %s237 = scalar_lea.vmem %s2, %s236
        $region28: #{tpu_custom_call.1} parent=15 // pred_fallthru
          _
        // Predicated region
        $region29: #{tpu_custom_call.1} parent=15 // pred_check
          %p238 = pneg %p132
        $region30: #{tpu_custom_call.1} parent=15 // pred_check_branch
          %240 = sbr.rel (%p238) target = $region32
        $region31: #{tpu_custom_call.1} parent=15 // pred_region
          %p241 = scmp.lt.s32.totalorder %s25, 1
          %s242 = scalar_select %p241, %s25, 1
          %p243 = scmp.lt.s32.totalorder %s26, 0
          %s244 = scalar_select %p243, %s26, 0
          %s245 = sadd.s32 %s244, %s242
          %s246 = smul.addr %s245, 2
          %s247 = scalar_lea.vmem %s3, %s246
        $region32: #{tpu_custom_call.1} parent=15 // pred_fallthru
          _
      $region16: #{tpu_custom_call.1} parent=5 // pred_fallthru
        _
      %p248 = scmp.le.s32.totalorder 1, %s18
      %p249 = scmp.lt.s32.totalorder %s18, 3
      %p250 = pnand %p248, %p249
      %p251 = pneg %p250
      // Predicated region
      $region33: #{tpu_custom_call.1} parent=5 // pred_check
        _
      $region34: #{tpu_custom_call.1} parent=5 // pred_check_branch
        %253 = sbr.rel (%p250) target = $region36
      $region35: #{tpu_custom_call.1} parent=5 // pred_region
        %s254 = ssub.s32 %s18, 1
        %p255 = scmp.lt.s32.totalorder %s27, 1
        %s256 = scalar_select %p255, %s27, 1
        %p257 = scmp.lt.s32.totalorder %s28, 0
        %s258 = scalar_select %p257, %s28, 0
        %s259 = sadd.s32 %s258, %s256
        %s260 = smul.addr %s259, 8
        %s261 = scalar_lea.vmem %s0, %s260
        %p262 = pneg %p58
        %p263 = pneg %p55
        %p264 = scmp.lt.s32.totalorder %s27, 1
        %s265 = scalar_select %p264, %s27, 1
        %s266 = smul.addr %s265, 4
        %s267 = smul.addr %s266, 8
        %s268 = scalar_lea.vmem %s1, %s267
        %p269 = pneg %p84
        %p270 = pneg %p81
        %p271 = scmp.lt.s32.totalorder %s27, 1
        %s272 = scalar_select %p271, %s27, 1
        %s273 = smul.addr %s272, 8
        %s274 = scalar_lea.vmem %s2, %s273
        %p275 = pneg %p110
        %p276 = pneg %p107
        %p277 = scmp.lt.s32.totalorder %s27, 1
        %s278 = scalar_select %p277, %s27, 1
        %p279 = scmp.lt.s32.totalorder %s28, 0
        %s280 = scalar_select %p279, %s28, 0
        %s281 = sadd.s32 %s280, %s278
        %s282 = smul.addr %s281, 2
        %s283 = scalar_lea.vmem %s3, %s282
        %p284 = pneg %p138
        %p285 = pneg %p135
        %p286 = pneg %p166
        %p287 = pneg %p163
        %s288 = sand.u32 %s153, 1
        %s289 = scalar_lea.sflag [#allocation3], %s288
        %s290 = sand.u32 %s153, 1
        %s291 = smul.addr %s290, 8
        %s292 = scalar_lea.vmem [#allocation2], %s291
        %p293 = pneg %p194
        %p294 = pneg %p191
        %s295 = sand.u32 %s181, 1
        %s296 = scalar_lea.sflag [#allocation5], %s295
        %s297 = sand.u32 %s181, 1
        %s298 = smul.addr %s297, 8
        %s299 = scalar_lea.vmem [#allocation4], %s298
        %p300 = scmp.lt.s32.totalorder %s27, 1
        %s301 = scalar_select %p300, %s27, 1
        %p302 = scmp.lt.s32.totalorder %s28, 0
        %s303 = scalar_select %p302, %s28, 0
        %s304 = sadd.s32 %s303, %s301
        %s305 = smul.addr %s304, 8
        %s306 = scalar_lea.vmem %s0, %s305
        %p307 = scmp.lt.s32.totalorder %s27, 1
        %s308 = scalar_select %p307, %s27, 1
        %s309 = smul.addr %s308, 4
        %s310 = smul.addr %s309, 8
        %s311 = scalar_lea.vmem %s1, %s310
        %p312 = scmp.lt.s32.totalorder %s27, 1
        %s313 = scalar_select %p312, %s27, 1
        %s314 = smul.addr %s313, 8
        %s315 = scalar_lea.vmem %s2, %s314
        %p316 = scmp.lt.s32.totalorder %s27, 1
        %s317 = scalar_select %p316, %s27, 1
        %p318 = scmp.lt.s32.totalorder %s28, 0
        %s319 = scalar_select %p318, %s28, 0
        %s320 = sadd.s32 %s319, %s317
        %s321 = smul.addr %s320, 2
        %s322 = scalar_lea.vmem %s3, %s321
        %v325 = vld [vmem:[%s322] sm:$0x3]
        %v326 = vld [vmem:[%s306] sm:$0xff]
        %v327 = vld [vmem:[%s311] sm:$0xff]
        %v328 = vld [vmem:[%s311 + $0x8] sm:$0xff]
        %v329 = vld [vmem:[%s311 + $0x10] sm:$0xff]
        %v330 = vld [vmem:[%s311 + $0x18] sm:$0xff]
        %v331 = vld [vmem:[%s315] sm:$0xff]
        %v332 = vmul.f32 %v326, 0.17677669
        %vm333 = vcmask 261120
        %v335 = vsel %vm333, %v332, 0
        %337 = vmatprep.subr.mxu0 0.0
        %338 = vmatpush1.msra.mxu0 0.0
        %339 = vmatprep.subr.mxu0 0.0
        %340 = vmatpush1.msra.mxu0 0.0
        %341 = vmatprep.subr.mxu0 0.0
        %342 = vmatpush1.msra.mxu0 0.0
        %343 = vmatprep.subr.mxu0 0.0
        %344 = vmatpush1.msra.mxu0 0.0
        %345 = vmatprep.subr.mxu0 0.0
        %346 = vmatpush1.msra.mxu0 0.0
        %347 = vmatprep.subr.mxu0 0.0
        %348 = vmatpush1.msra.mxu0 0.0
        %349 = vmatprep.subr.mxu0 0.0
        %350 = vmatpush1.msra.mxu0 0.0
        %351 = vmatprep.subr.mxu0 0.0
        %352 = vmatpush1.msra.mxu0 0.0
        %353 = vmatprep.subr.mxu0 0.0
        %354 = vmatpush1.msra.mxu0 0.0
        %355 = vmatprep.subr.mxu0 0.0
        %356 = vmatpush1.msra.mxu0 0.0
        %357 = vmatprep.subr.mxu0 0.0
        %358 = vmatpush1.msra.mxu0 0.0
        %359 = vmatprep.subr.mxu0 0.0
        %360 = vmatpush1.msra.mxu0 0.0
        %361 = vmatprep.subr.mxu0 0.0
        %v362 = vand.u32 %v330, 4294901760
        %363 = vmatpush1.msra.mxu0 %v362
        %364 = vmatprep.subr.mxu0 0.0
        %v365 = vand.u32 %v329, 4294901760
        %366 = vmatpush1.msra.mxu0 %v365
        %367 = vmatprep.subr.mxu0 0.0
        %v368 = vand.u32 %v328, 4294901760
        %369 = vmatpush1.msra.mxu0 %v368
        %370 = vmatprep.subr.mxu0 0.0
        %v371 = vand.u32 %v327, 4294901760
        %372 = vmatpush1.msra.mxu0 %v371
        %373 = vmatprep.subr.mxu0 0.0
        %374 = vmatpush2.msra.mxu0 0.0
        %375 = vmatprep.subr.mxu0 0.0
        %376 = vmatpush2.msra.mxu0 0.0
        %377 = vmatprep.subr.mxu0 0.0
        %378 = vmatpush2.msra.mxu0 0.0
        %379 = vmatprep.subr.mxu0 0.0
        %380 = vmatpush2.msra.mxu0 0.0
        %381 = vmatprep.subr.mxu0 0.0
        %382 = vmatpush2.msra.mxu0 0.0
        %383 = vmatprep.subr.mxu0 0.0
        %384 = vmatpush2.msra.mxu0 0.0
        %385 = vmatprep.subr.mxu0 0.0
        %386 = vmatpush2.msra.mxu0 0.0
        %387 = vmatprep.subr.mxu0 0.0
        %388 = vmatpush2.msra.mxu0 0.0
        %389 = vmatprep.subr.mxu0 0.0
        %390 = vmatpush2.msra.mxu0 0.0
        %391 = vmatprep.subr.mxu0 0.0
        %392 = vmatpush2.msra.mxu0 0.0
        %393 = vmatprep.subr.mxu0 0.0
        %394 = vmatpush2.msra.mxu0 0.0
        %395 = vmatprep.subr.mxu0 0.0
        %396 = vmatpush2.msra.mxu0 0.0
        %397 = vmatprep.subr.mxu0 0.0
        %398 = vmatpush2.msra.mxu0 0.0
        %399 = vmatprep.subr.mxu0 0.0
        %400 = vmatpush2.msra.mxu0 0.0
        %401 = vmatprep.subr.mxu0 0.0
        %402 = vmatpush2.msra.mxu0 0.0
        %403 = vmatprep.subr.mxu0 0.0
        %404 = vmatpush2.msra.mxu0 0.0
        %405 = vmatprep.mubr.f32.mxu0 0.0
        %v406 = vand.u32 %v335, 4294901760
        %v407 = vsub.f32 %v335, %v406
        %v408 = vand.u32 %v407, 4294901760
        %v409 = vsub.f32 %v407, %v408
        %v410 = vand.u32 %v409, 4294901760
        %411 = vmatmul.mubr.f32.gmra.mxu0 %v410
        %v412 = vpop.f32.mrf.mxu0
        %v413 = vadd.f32 0.0, %v412
        %v414 = vpop.f32.mrf.mxu0
        %415 = vdwg.mxu0
        %416 = vmatprep.subr.mxu0 0.0
        %417 = vmatpush1.msra.mxu0 0.0
        %418 = vmatprep.subr.mxu0 0.0
        %419 = vmatpush1.msra.mxu0 0.0
        %420 = vmatprep.subr.mxu0 0.0
        %421 = vmatpush1.msra.mxu0 0.0
        %422 = vmatprep.subr.mxu0 0.0
        %423 = vmatpush1.msra.mxu0 0.0
        %424 = vmatprep.subr.mxu0 0.0
        %425 = vmatpush1.msra.mxu0 0.0
        %426 = vmatprep.subr.mxu0 0.0
        %427 = vmatpush1.msra.mxu0 0.0
        %428 = vmatprep.subr.mxu0 0.0
        %429 = vmatpush1.msra.mxu0 0.0
        %430 = vmatprep.subr.mxu0 0.0
        %431 = vmatpush1.msra.mxu0 0.0
        %432 = vmatprep.subr.mxu0 0.0
        %433 = vmatpush1.msra.mxu0 0.0
        %434 = vmatprep.subr.mxu0 0.0
        %435 = vmatpush1.msra.mxu0 0.0
        %436 = vmatprep.subr.mxu0 0.0
        %437 = vmatpush1.msra.mxu0 0.0
        %438 = vmatprep.subr.mxu0 0.0
        %439 = vmatpush1.msra.mxu0 0.0
        %440 = vmatprep.subr.mxu0 0.0
        %v441 = vand.u32 %v330, 4294901760
        %v442 = vsub.f32 %v330, %v441
        %v443 = vand.u32 %v442, 4294901760
        %v444 = vsub.f32 %v442, %v443
        %v445 = vand.u32 %v444, 4294901760
        %446 = vmatpush1.msra.mxu0 %v445
        %447 = vmatprep.subr.mxu0 0.0
        %v448 = vand.u32 %v329, 4294901760
        %v449 = vsub.f32 %v329, %v448
        %v450 = vand.u32 %v449, 4294901760
        %v451 = vsub.f32 %v449, %v450
        %v452 = vand.u32 %v451, 4294901760
        %453 = vmatpush1.msra.mxu0 %v452
        %454 = vmatprep.subr.mxu0 0.0
        %v455 = vand.u32 %v328, 4294901760
        %v456 = vsub.f32 %v328, %v455
        %v457 = vand.u32 %v456, 4294901760
        %v458 = vsub.f32 %v456, %v457
        %v459 = vand.u32 %v458, 4294901760
        %460 = vmatpush1.msra.mxu0 %v459
        %461 = vmatprep.subr.mxu0 0.0
        %v462 = vand.u32 %v327, 4294901760
        %v463 = vsub.f32 %v327, %v462
        %v464 = vand.u32 %v463, 4294901760
        %v465 = vsub.f32 %v463, %v464
        %v466 = vand.u32 %v465, 4294901760
        %467 = vmatpush1.msra.mxu0 %v466
        %468 = vmatprep.subr.mxu0 0.0
        %469 = vmatpush2.msra.mxu0 0.0
        %470 = vmatprep.subr.mxu0 0.0
        %471 = vmatpush2.msra.mxu0 0.0
        %472 = vmatprep.subr.mxu0 0.0
        %473 = vmatpush2.msra.mxu0 0.0
        %474 = vmatprep.subr.mxu0 0.0
        %475 = vmatpush2.msra.mxu0 0.0
        %476 = vmatprep.subr.mxu0 0.0
        %477 = vmatpush2.msra.mxu0 0.0
        %478 = vmatprep.subr.mxu0 0.0
        %479 = vmatpush2.msra.mxu0 0.0
        %480 = vmatprep.subr.mxu0 0.0
        %481 = vmatpush2.msra.mxu0 0.0
        %482 = vmatprep.subr.mxu0 0.0
        %483 = vmatpush2.msra.mxu0 0.0
        %484 = vmatprep.subr.mxu0 0.0
        %485 = vmatpush2.msra.mxu0 0.0
        %486 = vmatprep.subr.mxu0 0.0
        %487 = vmatpush2.msra.mxu0 0.0
        %488 = vmatprep.subr.mxu0 0.0
        %489 = vmatpush2.msra.mxu0 0.0
        %490 = vmatprep.subr.mxu0 0.0
        %491 = vmatpush2.msra.mxu0 0.0
        %492 = vmatprep.subr.mxu0 0.0
        %493 = vmatpush2.msra.mxu0 0.0
        %494 = vmatprep.subr.mxu0 0.0
        %495 = vmatpush2.msra.mxu0 0.0
        %496 = vmatprep.subr.mxu0 0.0
        %497 = vmatpush2.msra.mxu0 0.0
        %498 = vmatprep.subr.mxu0 0.0
        %499 = vmatpush2.msra.mxu0 0.0
        %500 = vmatprep.mubr.f32.mxu0 0.0
        %v501 = vand.u32 %v335, 4294901760
        %502 = vmatmul.mubr.f32.gmra.mxu0 %v501
        %v503 = vpop.f32.mrf.mxu0
        %v504 = vadd.f32 %v413, %v503
        %v505 = vpop.f32.mrf.mxu0
        %506 = vdwg.mxu0
        %507 = vmatprep.subr.mxu0 0.0
        %508 = vmatpush1.msra.mxu0 0.0
        %509 = vmatprep.subr.mxu0 0.0
        %510 = vmatpush1.msra.mxu0 0.0
        %511 = vmatprep.subr.mxu0 0.0
        %512 = vmatpush1.msra.mxu0 0.0
        %513 = vmatprep.subr.mxu0 0.0
        %514 = vmatpush1.msra.mxu0 0.0
        %515 = vmatprep.subr.mxu0 0.0
        %516 = vmatpush1.msra.mxu0 0.0
        %517 = vmatprep.subr.mxu0 0.0
        %518 = vmatpush1.msra.mxu0 0.0
        %519 = vmatprep.subr.mxu0 0.0
        %520 = vmatpush1.msra.mxu0 0.0
        %521 = vmatprep.subr.mxu0 0.0
        %522 = vmatpush1.msra.mxu0 0.0
        %523 = vmatprep.subr.mxu0 0.0
        %524 = vmatpush1.msra.mxu0 0.0
        %525 = vmatprep.subr.mxu0 0.0
        %526 = vmatpush1.msra.mxu0 0.0
        %527 = vmatprep.subr.mxu0 0.0
        %528 = vmatpush1.msra.mxu0 0.0
        %529 = vmatprep.subr.mxu0 0.0
        %530 = vmatpush1.msra.mxu0 0.0
        %531 = vmatprep.subr.mxu0 0.0
        %v532 = vand.u32 %v330, 4294901760
        %v533 = vsub.f32 %v330, %v532
        %534 = vmatpush1.msra.mxu0 %v533
        %535 = vmatprep.subr.mxu0 0.0
        %v536 = vand.u32 %v329, 4294901760
        %v537 = vsub.f32 %v329, %v536
        %538 = vmatpush1.msra.mxu0 %v537
        %539 = vmatprep.subr.mxu0 0.0
        %v540 = vand.u32 %v328, 4294901760
        %v541 = vsub.f32 %v328, %v540
        %542 = vmatpush1.msra.mxu0 %v541
        %543 = vmatprep.subr.mxu0 0.0
        %v544 = vand.u32 %v327, 4294901760
        %v545 = vsub.f32 %v327, %v544
        %546 = vmatpush1.msra.mxu0 %v545
        %547 = vmatprep.subr.mxu0 0.0
        %548 = vmatpush2.msra.mxu0 0.0
        %549 = vmatprep.subr.mxu0 0.0
        %550 = vmatpush2.msra.mxu0 0.0
        %551 = vmatprep.subr.mxu0 0.0
        %552 = vmatpush2.msra.mxu0 0.0
        %553 = vmatprep.subr.mxu0 0.0
        %554 = vmatpush2.msra.mxu0 0.0
        %555 = vmatprep.subr.mxu0 0.0
        %556 = vmatpush2.msra.mxu0 0.0
        %557 = vmatprep.subr.mxu0 0.0
        %558 = vmatpush2.msra.mxu0 0.0
        %559 = vmatprep.subr.mxu0 0.0
        %560 = vmatpush2.msra.mxu0 0.0
        %561 = vmatprep.subr.mxu0 0.0
        %562 = vmatpush2.msra.mxu0 0.0
        %563 = vmatprep.subr.mxu0 0.0
        %564 = vmatpush2.msra.mxu0 0.0
        %565 = vmatprep.subr.mxu0 0.0
        %566 = vmatpush2.msra.mxu0 0.0
        %567 = vmatprep.subr.mxu0 0.0
        %568 = vmatpush2.msra.mxu0 0.0
        %569 = vmatprep.subr.mxu0 0.0
        %570 = vmatpush2.msra.mxu0 0.0
        %571 = vmatprep.subr.mxu0 0.0
        %572 = vmatpush2.msra.mxu0 0.0
        %573 = vmatprep.subr.mxu0 0.0
        %574 = vmatpush2.msra.mxu0 0.0
        %575 = vmatprep.subr.mxu0 0.0
        %576 = vmatpush2.msra.mxu0 0.0
        %577 = vmatprep.subr.mxu0 0.0
        %578 = vmatpush2.msra.mxu0 0.0
        %579 = vmatprep.mubr.f32.mxu0 0.0
        %v580 = vand.u32 %v335, 4294901760
        %v581 = vsub.f32 %v335, %v580
        %582 = vmatmul.mubr.f32.gmra.mxu0 %v581
        %v583 = vpop.f32.mrf.mxu0
        %v584 = vadd.f32 %v504, %v583
        %v585 = vpop.f32.mrf.mxu0
        %586 = vdwg.mxu0
        %587 = vmatprep.subr.mxu0 0.0
        %588 = vmatpush1.msra.mxu0 0.0
        %589 = vmatprep.subr.mxu0 0.0
        %590 = vmatpush1.msra.mxu0 0.0
        %591 = vmatprep.subr.mxu0 0.0
        %592 = vmatpush1.msra.mxu0 0.0
        %593 = vmatprep.subr.mxu0 0.0
        %594 = vmatpush1.msra.mxu0 0.0
        %595 = vmatprep.subr.mxu0 0.0
        %596 = vmatpush1.msra.mxu0 0.0
        %597 = vmatprep.subr.mxu0 0.0
        %598 = vmatpush1.msra.mxu0 0.0
        %599 = vmatprep.subr.mxu0 0.0
        %600 = vmatpush1.msra.mxu0 0.0
        %601 = vmatprep.subr.mxu0 0.0
        %602 = vmatpush1.msra.mxu0 0.0
        %603 = vmatprep.subr.mxu0 0.0
        %604 = vmatpush1.msra.mxu0 0.0
        %605 = vmatprep.subr.mxu0 0.0
        %606 = vmatpush1.msra.mxu0 0.0
        %607 = vmatprep.subr.mxu0 0.0
        %608 = vmatpush1.msra.mxu0 0.0
        %609 = vmatprep.subr.mxu0 0.0
        %610 = vmatpush1.msra.mxu0 0.0
        %611 = vmatprep.subr.mxu0 0.0
        %v612 = vand.u32 %v330, 4294901760
        %613 = vmatpush1.msra.mxu0 %v612
        %614 = vmatprep.subr.mxu0 0.0
        %v615 = vand.u32 %v329, 4294901760
        %616 = vmatpush1.msra.mxu0 %v615
        %617 = vmatprep.subr.mxu0 0.0
        %v618 = vand.u32 %v328, 4294901760
        %619 = vmatpush1.msra.mxu0 %v618
        %620 = vmatprep.subr.mxu0 0.0
        %v621 = vand.u32 %v327, 4294901760
        %622 = vmatpush1.msra.mxu0 %v621
        %623 = vmatprep.subr.mxu0 0.0
        %624 = vmatpush2.msra.mxu0 0.0
        %625 = vmatprep.subr.mxu0 0.0
        %626 = vmatpush2.msra.mxu0 0.0
        %627 = vmatprep.subr.mxu0 0.0
        %628 = vmatpush2.msra.mxu0 0.0
        %629 = vmatprep.subr.mxu0 0.0
        %630 = vmatpush2.msra.mxu0 0.0
        %631 = vmatprep.subr.mxu0 0.0
        %632 = vmatpush2.msra.mxu0 0.0
        %633 = vmatprep.subr.mxu0 0.0
        %634 = vmatpush2.msra.mxu0 0.0
        %635 = vmatprep.subr.mxu0 0.0
        %636 = vmatpush2.msra.mxu0 0.0
        %637 = vmatprep.subr.mxu0 0.0
        %638 = vmatpush2.msra.mxu0 0.0
        %639 = vmatprep.subr.mxu0 0.0
        %640 = vmatpush2.msra.mxu0 0.0
        %641 = vmatprep.subr.mxu0 0.0
        %642 = vmatpush2.msra.mxu0 0.0
        %643 = vmatprep.subr.mxu0 0.0
        %644 = vmatpush2.msra.mxu0 0.0
        %645 = vmatprep.subr.mxu0 0.0
        %646 = vmatpush2.msra.mxu0 0.0
        %647 = vmatprep.subr.mxu0 0.0
        %648 = vmatpush2.msra.mxu0 0.0
        %649 = vmatprep.subr.mxu0 0.0
        %650 = vmatpush2.msra.mxu0 0.0
        %651 = vmatprep.subr.mxu0 0.0
        %652 = vmatpush2.msra.mxu0 0.0
        %653 = vmatprep.subr.mxu0 0.0
        %654 = vmatpush2.msra.mxu0 0.0
        %655 = vmatprep.mubr.f32.mxu0 0.0
        %v656 = vand.u32 %v335, 4294901760
        %v657 = vsub.f32 %v335, %v656
        %v658 = vand.u32 %v657, 4294901760
        %659 = vmatmul.mubr.f32.gmra.mxu0 %v658
        %v660 = vpop.f32.mrf.mxu0
        %v661 = vadd.f32 %v584, %v660
        %v662 = vpop.f32.mrf.mxu0
        %663 = vdwg.mxu0
        %664 = vmatprep.subr.mxu0 0.0
        %665 = vmatpush1.msra.mxu0 0.0
        %666 = vmatprep.subr.mxu0 0.0
        %667 = vmatpush1.msra.mxu0 0.0
        %668 = vmatprep.subr.mxu0 0.0
        %669 = vmatpush1.msra.mxu0 0.0
        %670 = vmatprep.subr.mxu0 0.0
        %671 = vmatpush1.msra.mxu0 0.0
        %672 = vmatprep.subr.mxu0 0.0
        %673 = vmatpush1.msra.mxu0 0.0
        %674 = vmatprep.subr.mxu0 0.0
        %675 = vmatpush1.msra.mxu0 0.0
        %676 = vmatprep.subr.mxu0 0.0
        %677 = vmatpush1.msra.mxu0 0.0
        %678 = vmatprep.subr.mxu0 0.0
        %679 = vmatpush1.msra.mxu0 0.0
        %680 = vmatprep.subr.mxu0 0.0
        %681 = vmatpush1.msra.mxu0 0.0
        %682 = vmatprep.subr.mxu0 0.0
        %683 = vmatpush1.msra.mxu0 0.0
        %684 = vmatprep.subr.mxu0 0.0
        %685 = vmatpush1.msra.mxu0 0.0
        %686 = vmatprep.subr.mxu0 0.0
        %687 = vmatpush1.msra.mxu0 0.0
        %688 = vmatprep.subr.mxu0 0.0
        %v689 = vand.u32 %v330, 4294901760
        %v690 = vsub.f32 %v330, %v689
        %v691 = vand.u32 %v690, 4294901760
        %692 = vmatpush1.msra.mxu0 %v691
        %693 = vmatprep.subr.mxu0 0.0
        %v694 = vand.u32 %v329, 4294901760
        %v695 = vsub.f32 %v329, %v694
        %v696 = vand.u32 %v695, 4294901760
        %697 = vmatpush1.msra.mxu0 %v696
        %698 = vmatprep.subr.mxu0 0.0
        %v699 = vand.u32 %v328, 4294901760
        %v700 = vsub.f32 %v328, %v699
        %v701 = vand.u32 %v700, 4294901760
        %702 = vmatpush1.msra.mxu0 %v701
        %703 = vmatprep.subr.mxu0 0.0
        %v704 = vand.u32 %v327, 4294901760
        %v705 = vsub.f32 %v327, %v704
        %v706 = vand.u32 %v705, 4294901760
        %707 = vmatpush1.msra.mxu0 %v706
        %708 = vmatprep.subr.mxu0 0.0
        %709 = vmatpush2.msra.mxu0 0.0
        %710 = vmatprep.subr.mxu0 0.0
        %711 = vmatpush2.msra.mxu0 0.0
        %712 = vmatprep.subr.mxu0 0.0
        %713 = vmatpush2.msra.mxu0 0.0
        %714 = vmatprep.subr.mxu0 0.0
        %715 = vmatpush2.msra.mxu0 0.0
        %716 = vmatprep.subr.mxu0 0.0
        %717 = vmatpush2.msra.mxu0 0.0
        %718 = vmatprep.subr.mxu0 0.0
        %719 = vmatpush2.msra.mxu0 0.0
        %720 = vmatprep.subr.mxu0 0.0
        %721 = vmatpush2.msra.mxu0 0.0
        %722 = vmatprep.subr.mxu0 0.0
        %723 = vmatpush2.msra.mxu0 0.0
        %724 = vmatprep.subr.mxu0 0.0
        %725 = vmatpush2.msra.mxu0 0.0
        %726 = vmatprep.subr.mxu0 0.0
        %727 = vmatpush2.msra.mxu0 0.0
        %728 = vmatprep.subr.mxu0 0.0
        %729 = vmatpush2.msra.mxu0 0.0
        %730 = vmatprep.subr.mxu0 0.0
        %731 = vmatpush2.msra.mxu0 0.0
        %732 = vmatprep.subr.mxu0 0.0
        %733 = vmatpush2.msra.mxu0 0.0
        %734 = vmatprep.subr.mxu0 0.0
        %735 = vmatpush2.msra.mxu0 0.0
        %736 = vmatprep.subr.mxu0 0.0
        %737 = vmatpush2.msra.mxu0 0.0
        %738 = vmatprep.subr.mxu0 0.0
        %739 = vmatpush2.msra.mxu0 0.0
        %740 = vmatprep.mubr.f32.mxu0 0.0
        %v741 = vand.u32 %v335, 4294901760
        %742 = vmatmul.mubr.f32.gmra.mxu0 %v741
        %v743 = vpop.f32.mrf.mxu0
        %v744 = vadd.f32 %v661, %v743
        %v745 = vpop.f32.mrf.mxu0
        %746 = vdwg.mxu0
        %747 = vmatprep.subr.mxu0 0.0
        %748 = vmatpush1.msra.mxu0 0.0
        %749 = vmatprep.subr.mxu0 0.0
        %750 = vmatpush1.msra.mxu0 0.0
        %751 = vmatprep.subr.mxu0 0.0
        %752 = vmatpush1.msra.mxu0 0.0
        %753 = vmatprep.subr.mxu0 0.0
        %754 = vmatpush1.msra.mxu0 0.0
        %755 = vmatprep.subr.mxu0 0.0
        %756 = vmatpush1.msra.mxu0 0.0
        %757 = vmatprep.subr.mxu0 0.0
        %758 = vmatpush1.msra.mxu0 0.0
        %759 = vmatprep.subr.mxu0 0.0
        %760 = vmatpush1.msra.mxu0 0.0
        %761 = vmatprep.subr.mxu0 0.0
        %762 = vmatpush1.msra.mxu0 0.0
        %763 = vmatprep.subr.mxu0 0.0
        %764 = vmatpush1.msra.mxu0 0.0
        %765 = vmatprep.subr.mxu0 0.0
        %766 = vmatpush1.msra.mxu0 0.0
        %767 = vmatprep.subr.mxu0 0.0
        %768 = vmatpush1.msra.mxu0 0.0
        %769 = vmatprep.subr.mxu0 0.0
        %770 = vmatpush1.msra.mxu0 0.0
        %771 = vmatprep.subr.mxu0 0.0
        %v772 = vand.u32 %v330, 4294901760
        %773 = vmatpush1.msra.mxu0 %v772
        %774 = vmatprep.subr.mxu0 0.0
        %v775 = vand.u32 %v329, 4294901760
        %776 = vmatpush1.msra.mxu0 %v775
        %777 = vmatprep.subr.mxu0 0.0
        %v778 = vand.u32 %v328, 4294901760
        %779 = vmatpush1.msra.mxu0 %v778
        %780 = vmatprep.subr.mxu0 0.0
        %v781 = vand.u32 %v327, 4294901760
        %782 = vmatpush1.msra.mxu0 %v781
        %783 = vmatprep.subr.mxu0 0.0
        %784 = vmatpush2.msra.mxu0 0.0
        %785 = vmatprep.subr.mxu0 0.0
        %786 = vmatpush2.msra.mxu0 0.0
        %787 = vmatprep.subr.mxu0 0.0
        %788 = vmatpush2.msra.mxu0 0.0
        %789 = vmatprep.subr.mxu0 0.0
        %790 = vmatpush2.msra.mxu0 0.0
        %791 = vmatprep.subr.mxu0 0.0
        %792 = vmatpush2.msra.mxu0 0.0
        %793 = vmatprep.subr.mxu0 0.0
        %794 = vmatpush2.msra.mxu0 0.0
        %795 = vmatprep.subr.mxu0 0.0
        %796 = vmatpush2.msra.mxu0 0.0
        %797 = vmatprep.subr.mxu0 0.0
        %798 = vmatpush2.msra.mxu0 0.0
        %799 = vmatprep.subr.mxu0 0.0
        %800 = vmatpush2.msra.mxu0 0.0
        %801 = vmatprep.subr.mxu0 0.0
        %802 = vmatpush2.msra.mxu0 0.0
        %803 = vmatprep.subr.mxu0 0.0
        %804 = vmatpush2.msra.mxu0 0.0
        %805 = vmatprep.subr.mxu0 0.0
        %806 = vmatpush2.msra.mxu0 0.0
        %807 = vmatprep.subr.mxu0 0.0
        %808 = vmatpush2.msra.mxu0 0.0
        %809 = vmatprep.subr.mxu0 0.0
        %810 = vmatpush2.msra.mxu0 0.0
        %811 = vmatprep.subr.mxu0 0.0
        %812 = vmatpush2.msra.mxu0 0.0
        %813 = vmatprep.subr.mxu0 0.0
        %814 = vmatpush2.msra.mxu0 0.0
        %815 = vmatprep.mubr.f32.mxu0 0.0
        %v816 = vand.u32 %v335, 4294901760
        %817 = vmatmul.mubr.f32.gmra.mxu0 %v816
        %v818 = vpop.f32.mrf.mxu0
        %v819 = vadd.f32 %v744, %v818
        %v820 = vpop.f32.mrf.mxu0
        %821 = vdwg.mxu0
        %vm822 = vnez %v325
        %v823 = vsel %vm822, 16843009, 0
        %v824 = vunpack.c.0.s8 %v823
        %vm825 = vcmp.ne.s32.totalorder %v824, 0
        %v826 = vsel %vm825, -1e+32, %v819
        %vm827 = vcmask 64512
        %v828 = vsel %vm827, %v826, -inf
        %829 = vmax.xlane.f32.xlu0 %v828
        %v830 = vpop.xlane.xlu0 %829
        %v831 = vsub.f32 %v826, %v830
        %v832 = vmul.f32 %v831, 1.442695
        %v833 = vpow.pop %v832
        %v834 = vsel %vm827, %v833, 0.0
        %835 = vadd.xlane.f32.xlu0 %v834
        %v836 = vpop.xlane.xlu0 %835
        %v838 = vsel %vm827, %v833, 0
        %840 = vmatprep.subr.mxu0 0.0
        %841 = vmatpush1.msra.mxu0 0.0
        %842 = vmatprep.subr.mxu0 0.0
        %843 = vmatpush1.msra.mxu0 0.0
        %844 = vmatprep.subr.mxu0 0.0
        %845 = vmatpush1.msra.mxu0 0.0
        %846 = vmatprep.subr.mxu0 0.0
        %847 = vmatpush1.msra.mxu0 0.0
        %848 = vmatprep.subr.mxu0 0.0
        %849 = vmatpush1.msra.mxu0 0.0
        %850 = vmatprep.subr.mxu0 0.0
        %851 = vmatpush1.msra.mxu0 0.0
        %852 = vmatprep.subr.mxu0 0.0
        %853 = vmatpush1.msra.mxu0 0.0
        %854 = vmatprep.subr.mxu0 0.0
        %855 = vmatpush1.msra.mxu0 0.0
        %856 = vmatprep.subr.mxu0 0.0
        %857 = vmatpush1.msra.mxu0 0.0
        %858 = vmatprep.subr.mxu0 0.0
        %859 = vmatpush1.msra.mxu0 0.0
        %860 = vmatprep.subr.mxu0 0.0
        %861 = vmatpush1.msra.mxu0 0.0
        %862 = vmatprep.subr.mxu0 0.0
        %863 = vmatpush1.msra.mxu0 0.0
        %864 = vmatprep.subr.mxu0 0.0
        %865 = vmatpush1.msra.mxu0 0.0
        %866 = vmatprep.subr.mxu0 0.0
        %867 = vmatpush1.msra.mxu0 0.0
        %868 = vmatprep.subr.mxu0 0.0
        %869 = vmatpush1.msra.mxu0 0.0
        %870 = vmatprep.subr.mxu0 0.0
        %v871 = vand.u32 %v331, 4294901760
        %872 = vmatpush1.msra.mxu0 %v871
        %873 = vmatprep.subr.mxu0 0.0
        %874 = vmatpush2.msra.mxu0 0.0
        %875 = vmatprep.subr.mxu0 0.0
        %876 = vmatpush2.msra.mxu0 0.0
        %877 = vmatprep.subr.mxu0 0.0
        %878 = vmatpush2.msra.mxu0 0.0
        %879 = vmatprep.subr.mxu0 0.0
        %880 = vmatpush2.msra.mxu0 0.0
        %881 = vmatprep.subr.mxu0 0.0
        %882 = vmatpush2.msra.mxu0 0.0
        %883 = vmatprep.subr.mxu0 0.0
        %884 = vmatpush2.msra.mxu0 0.0
        %885 = vmatprep.subr.mxu0 0.0
        %886 = vmatpush2.msra.mxu0 0.0
        %887 = vmatprep.subr.mxu0 0.0
        %888 = vmatpush2.msra.mxu0 0.0
        %889 = vmatprep.subr.mxu0 0.0
        %890 = vmatpush2.msra.mxu0 0.0
        %891 = vmatprep.subr.mxu0 0.0
        %892 = vmatpush2.msra.mxu0 0.0
        %893 = vmatprep.subr.mxu0 0.0
        %894 = vmatpush2.msra.mxu0 0.0
        %895 = vmatprep.subr.mxu0 0.0
        %896 = vmatpush2.msra.mxu0 0.0
        %897 = vmatprep.subr.mxu0 0.0
        %898 = vmatpush2.msra.mxu0 0.0
        %899 = vmatprep.subr.mxu0 0.0
        %900 = vmatpush2.msra.mxu0 0.0
        %901 = vmatprep.subr.mxu0 0.0
        %902 = vmatpush2.msra.mxu0 0.0
        %903 = vmatprep.subr.mxu0 0.0
        %904 = vmatpush2.msra.mxu0 0.0
        %905 = vmatprep.mubr.f32.mxu0 0.0
        %v906 = vand.u32 %v838, 4294901760
        %v907 = vsub.f32 %v838, %v906
        %v908 = vand.u32 %v907, 4294901760
        %v909 = vsub.f32 %v907, %v908
        %v910 = vand.u32 %v909, 4294901760
        %911 = vmatmul.mubr.f32.gmra.mxu0 %v910
        %v912 = vpop.f32.mrf.mxu0
        %v913 = vadd.f32 0.0, %v912
        %v914 = vpop.f32.mrf.mxu0
        %915 = vdwg.mxu0
        %916 = vmatprep.subr.mxu0 0.0
        %917 = vmatpush1.msra.mxu0 0.0
        %918 = vmatprep.subr.mxu0 0.0
        %919 = vmatpush1.msra.mxu0 0.0
        %920 = vmatprep.subr.mxu0 0.0
        %921 = vmatpush1.msra.mxu0 0.0
        %922 = vmatprep.subr.mxu0 0.0
        %923 = vmatpush1.msra.mxu0 0.0
        %924 = vmatprep.subr.mxu0 0.0
        %925 = vmatpush1.msra.mxu0 0.0
        %926 = vmatprep.subr.mxu0 0.0
        %927 = vmatpush1.msra.mxu0 0.0
        %928 = vmatprep.subr.mxu0 0.0
        %929 = vmatpush1.msra.mxu0 0.0
        %930 = vmatprep.subr.mxu0 0.0
        %931 = vmatpush1.msra.mxu0 0.0
        %932 = vmatprep.subr.mxu0 0.0
        %933 = vmatpush1.msra.mxu0 0.0
        %934 = vmatprep.subr.mxu0 0.0
        %935 = vmatpush1.msra.mxu0 0.0
        %936 = vmatprep.subr.mxu0 0.0
        %937 = vmatpush1.msra.mxu0 0.0
        %938 = vmatprep.subr.mxu0 0.0
        %939 = vmatpush1.msra.mxu0 0.0
        %940 = vmatprep.subr.mxu0 0.0
        %941 = vmatpush1.msra.mxu0 0.0
        %942 = vmatprep.subr.mxu0 0.0
        %943 = vmatpush1.msra.mxu0 0.0
        %944 = vmatprep.subr.mxu0 0.0
        %945 = vmatpush1.msra.mxu0 0.0
        %946 = vmatprep.subr.mxu0 0.0
        %v947 = vand.u32 %v331, 4294901760
        %v948 = vsub.f32 %v331, %v947
        %v949 = vand.u32 %v948, 4294901760
        %v950 = vsub.f32 %v948, %v949
        %v951 = vand.u32 %v950, 4294901760
        %952 = vmatpush1.msra.mxu0 %v951
        %953 = vmatprep.subr.mxu0 0.0
        %954 = vmatpush2.msra.mxu0 0.0
        %955 = vmatprep.subr.mxu0 0.0
        %956 = vmatpush2.msra.mxu0 0.0
        %957 = vmatprep.subr.mxu0 0.0
        %958 = vmatpush2.msra.mxu0 0.0
        %959 = vmatprep.subr.mxu0 0.0
        %960 = vmatpush2.msra.mxu0 0.0
        %961 = vmatprep.subr.mxu0 0.0
        %962 = vmatpush2.msra.mxu0 0.0
        %963 = vmatprep.subr.mxu0 0.0
        %964 = vmatpush2.msra.mxu0 0.0
        %965 = vmatprep.subr.mxu0 0.0
        %966 = vmatpush2.msra.mxu0 0.0
        %967 = vmatprep.subr.mxu0 0.0
        %968 = vmatpush2.msra.mxu0 0.0
        %969 = vmatprep.subr.mxu0 0.0
        %970 = vmatpush2.msra.mxu0 0.0
        %971 = vmatprep.subr.mxu0 0.0
        %972 = vmatpush2.msra.mxu0 0.0
        %973 = vmatprep.subr.mxu0 0.0
        %974 = vmatpush2.msra.mxu0 0.0
        %975 = vmatprep.subr.mxu0 0.0
        %976 = vmatpush2.msra.mxu0 0.0
        %977 = vmatprep.subr.mxu0 0.0
        %978 = vmatpush2.msra.mxu0 0.0
        %979 = vmatprep.subr.mxu0 0.0
        %980 = vmatpush2.msra.mxu0 0.0
        %981 = vmatprep.subr.mxu0 0.0
        %982 = vmatpush2.msra.mxu0 0.0
        %983 = vmatprep.subr.mxu0 0.0
        %984 = vmatpush2.msra.mxu0 0.0
        %985 = vmatprep.mubr.f32.mxu0 0.0
        %v986 = vand.u32 %v838, 4294901760
        %987 = vmatmul.mubr.f32.gmra.mxu0 %v986
        %v988 = vpop.f32.mrf.mxu0
        %v989 = vadd.f32 %v913, %v988
        %v990 = vpop.f32.mrf.mxu0
        %991 = vdwg.mxu0
        %992 = vmatprep.subr.mxu0 0.0
        %993 = vmatpush1.msra.mxu0 0.0
        %994 = vmatprep.subr.mxu0 0.0
        %995 = vmatpush1.msra.mxu0 0.0
        %996 = vmatprep.subr.mxu0 0.0
        %997 = vmatpush1.msra.mxu0 0.0
        %998 = vmatprep.subr.mxu0 0.0
        %999 = vmatpush1.msra.mxu0 0.0
        %1000 = vmatprep.subr.mxu0 0.0
        %1001 = vmatpush1.msra.mxu0 0.0
        %1002 = vmatprep.subr.mxu0 0.0
        %1003 = vmatpush1.msra.mxu0 0.0
        %1004 = vmatprep.subr.mxu0 0.0
        %1005 = vmatpush1.msra.mxu0 0.0
        %1006 = vmatprep.subr.mxu0 0.0
        %1007 = vmatpush1.msra.mxu0 0.0
        %1008 = vmatprep.subr.mxu0 0.0
        %1009 = vmatpush1.msra.mxu0 0.0
        %1010 = vmatprep.subr.mxu0 0.0
        %1011 = vmatpush1.msra.mxu0 0.0
        %1012 = vmatprep.subr.mxu0 0.0
        %1013 = vmatpush1.msra.mxu0 0.0
        %1014 = vmatprep.subr.mxu0 0.0
        %1015 = vmatpush1.msra.mxu0 0.0
        %1016 = vmatprep.subr.mxu0 0.0
        %1017 = vmatpush1.msra.mxu0 0.0
        %1018 = vmatprep.subr.mxu0 0.0
        %1019 = vmatpush1.msra.mxu0 0.0
        %1020 = vmatprep.subr.mxu0 0.0
        %1021 = vmatpush1.msra.mxu0 0.0
        %1022 = vmatprep.subr.mxu0 0.0
        %v1023 = vand.u32 %v331, 4294901760
        %v1024 = vsub.f32 %v331, %v1023
        %1025 = vmatpush1.msra.mxu0 %v1024
        %1026 = vmatprep.subr.mxu0 0.0
        %1027 = vmatpush2.msra.mxu0 0.0
        %1028 = vmatprep.subr.mxu0 0.0
        %1029 = vmatpush2.msra.mxu0 0.0
        %1030 = vmatprep.subr.mxu0 0.0
        %1031 = vmatpush2.msra.mxu0 0.0
        %1032 = vmatprep.subr.mxu0 0.0
        %1033 = vmatpush2.msra.mxu0 0.0
        %1034 = vmatprep.subr.mxu0 0.0
        %1035 = vmatpush2.msra.mxu0 0.0
        %1036 = vmatprep.subr.mxu0 0.0
        %1037 = vmatpush2.msra.mxu0 0.0
        %1038 = vmatprep.subr.mxu0 0.0
        %1039 = vmatpush2.msra.mxu0 0.0
        %1040 = vmatprep.subr.mxu0 0.0
        %1041 = vmatpush2.msra.mxu0 0.0
        %1042 = vmatprep.subr.mxu0 0.0
        %1043 = vmatpush2.msra.mxu0 0.0
        %1044 = vmatprep.subr.mxu0 0.0
        %1045 = vmatpush2.msra.mxu0 0.0
        %1046 = vmatprep.subr.mxu0 0.0
        %1047 = vmatpush2.msra.mxu0 0.0
        %1048 = vmatprep.subr.mxu0 0.0
        %1049 = vmatpush2.msra.mxu0 0.0
        %1050 = vmatprep.subr.mxu0 0.0
        %1051 = vmatpush2.msra.mxu0 0.0
        %1052 = vmatprep.subr.mxu0 0.0
        %1053 = vmatpush2.msra.mxu0 0.0
        %1054 = vmatprep.subr.mxu0 0.0
        %1055 = vmatpush2.msra.mxu0 0.0
        %1056 = vmatprep.subr.mxu0 0.0
        %1057 = vmatpush2.msra.mxu0 0.0
        %1058 = vmatprep.mubr.f32.mxu0 0.0
        %v1059 = vand.u32 %v838, 4294901760
        %v1060 = vsub.f32 %v838, %v1059
        %1061 = vmatmul.mubr.f32.gmra.mxu0 %v1060
        %v1062 = vpop.f32.mrf.mxu0
        %v1063 = vadd.f32 %v989, %v1062
        %v1064 = vpop.f32.mrf.mxu0
        %1065 = vdwg.mxu0
        %1066 = vmatprep.subr.mxu0 0.0
        %1067 = vmatpush1.msra.mxu0 0.0
        %1068 = vmatprep.subr.mxu0 0.0
        %1069 = vmatpush1.msra.mxu0 0.0
        %1070 = vmatprep.subr.mxu0 0.0
        %1071 = vmatpush1.msra.mxu0 0.0
        %1072 = vmatprep.subr.mxu0 0.0
        %1073 = vmatpush1.msra.mxu0 0.0
        %1074 = vmatprep.subr.mxu0 0.0
        %1075 = vmatpush1.msra.mxu0 0.0
        %1076 = vmatprep.subr.mxu0 0.0
        %1077 = vmatpush1.msra.mxu0 0.0
        %1078 = vmatprep.subr.mxu0 0.0
        %1079 = vmatpush1.msra.mxu0 0.0
        %1080 = vmatprep.subr.mxu0 0.0
        %1081 = vmatpush1.msra.mxu0 0.0
        %1082 = vmatprep.subr.mxu0 0.0
        %1083 = vmatpush1.msra.mxu0 0.0
        %1084 = vmatprep.subr.mxu0 0.0
        %1085 = vmatpush1.msra.mxu0 0.0
        %1086 = vmatprep.subr.mxu0 0.0
        %1087 = vmatpush1.msra.mxu0 0.0
        %1088 = vmatprep.subr.mxu0 0.0
        %1089 = vmatpush1.msra.mxu0 0.0
        %1090 = vmatprep.subr.mxu0 0.0
        %1091 = vmatpush1.msra.mxu0 0.0
        %1092 = vmatprep.subr.mxu0 0.0
        %1093 = vmatpush1.msra.mxu0 0.0
        %1094 = vmatprep.subr.mxu0 0.0
        %1095 = vmatpush1.msra.mxu0 0.0
        %1096 = vmatprep.subr.mxu0 0.0
        %v1097 = vand.u32 %v331, 4294901760
        %1098 = vmatpush1.msra.mxu0 %v1097
        %1099 = vmatprep.subr.mxu0 0.0
        %1100 = vmatpush2.msra.mxu0 0.0
        %1101 = vmatprep.subr.mxu0 0.0
        %1102 = vmatpush2.msra.mxu0 0.0
        %1103 = vmatprep.subr.mxu0 0.0
        %1104 = vmatpush2.msra.mxu0 0.0
        %1105 = vmatprep.subr.mxu0 0.0
        %1106 = vmatpush2.msra.mxu0 0.0
        %1107 = vmatprep.subr.mxu0 0.0
        %1108 = vmatpush2.msra.mxu0 0.0
        %1109 = vmatprep.subr.mxu0 0.0
        %1110 = vmatpush2.msra.mxu0 0.0
        %1111 = vmatprep.subr.mxu0 0.0
        %1112 = vmatpush2.msra.mxu0 0.0
        %1113 = vmatprep.subr.mxu0 0.0
        %1114 = vmatpush2.msra.mxu0 0.0
        %1115 = vmatprep.subr.mxu0 0.0
        %1116 = vmatpush2.msra.mxu0 0.0
        %1117 = vmatprep.subr.mxu0 0.0
        %1118 = vmatpush2.msra.mxu0 0.0
        %1119 = vmatprep.subr.mxu0 0.0
        %1120 = vmatpush2.msra.mxu0 0.0
        %1121 = vmatprep.subr.mxu0 0.0
        %1122 = vmatpush2.msra.mxu0 0.0
        %1123 = vmatprep.subr.mxu0 0.0
        %1124 = vmatpush2.msra.mxu0 0.0
        %1125 = vmatprep.subr.mxu0 0.0
        %1126 = vmatpush2.msra.mxu0 0.0
        %1127 = vmatprep.subr.mxu0 0.0
        %1128 = vmatpush2.msra.mxu0 0.0
        %1129 = vmatprep.subr.mxu0 0.0
        %1130 = vmatpush2.msra.mxu0 0.0
        %1131 = vmatprep.mubr.f32.mxu0 0.0
        %v1132 = vand.u32 %v838, 4294901760
        %v1133 = vsub.f32 %v838, %v1132
        %v1134 = vand.u32 %v1133, 4294901760
        %1135 = vmatmul.mubr.f32.gmra.mxu0 %v1134
        %v1136 = vpop.f32.mrf.mxu0
        %v1137 = vadd.f32 %v1063, %v1136
        %v1138 = vpop.f32.mrf.mxu0
        %1139 = vdwg.mxu0
        %1140 = vmatprep.subr.mxu0 0.0
        %1141 = vmatpush1.msra.mxu0 0.0
        %1142 = vmatprep.subr.mxu0 0.0
        %1143 = vmatpush1.msra.mxu0 0.0
        %1144 = vmatprep.subr.mxu0 0.0
        %1145 = vmatpush1.msra.mxu0 0.0
        %1146 = vmatprep.subr.mxu0 0.0
        %1147 = vmatpush1.msra.mxu0 0.0
        %1148 = vmatprep.subr.mxu0 0.0
        %1149 = vmatpush1.msra.mxu0 0.0
        %1150 = vmatprep.subr.mxu0 0.0
        %1151 = vmatpush1.msra.mxu0 0.0
        %1152 = vmatprep.subr.mxu0 0.0
        %1153 = vmatpush1.msra.mxu0 0.0
        %1154 = vmatprep.subr.mxu0 0.0
        %1155 = vmatpush1.msra.mxu0 0.0
        %1156 = vmatprep.subr.mxu0 0.0
        %1157 = vmatpush1.msra.mxu0 0.0
        %1158 = vmatprep.subr.mxu0 0.0
        %1159 = vmatpush1.msra.mxu0 0.0
        %1160 = vmatprep.subr.mxu0 0.0
        %1161 = vmatpush1.msra.mxu0 0.0
        %1162 = vmatprep.subr.mxu0 0.0
        %1163 = vmatpush1.msra.mxu0 0.0
        %1164 = vmatprep.subr.mxu0 0.0
        %1165 = vmatpush1.msra.mxu0 0.0
        %1166 = vmatprep.subr.mxu0 0.0
        %1167 = vmatpush1.msra.mxu0 0.0
        %1168 = vmatprep.subr.mxu0 0.0
        %1169 = vmatpush1.msra.mxu0 0.0
        %1170 = vmatprep.subr.mxu0 0.0
        %v1171 = vand.u32 %v331, 4294901760
        %v1172 = vsub.f32 %v331, %v1171
        %v1173 = vand.u32 %v1172, 4294901760
        %1174 = vmatpush1.msra.mxu0 %v1173
        %1175 = vmatprep.subr.mxu0 0.0
        %1176 = vmatpush2.msra.mxu0 0.0
        %1177 = vmatprep.subr.mxu0 0.0
        %1178 = vmatpush2.msra.mxu0 0.0
        %1179 = vmatprep.subr.mxu0 0.0
        %1180 = vmatpush2.msra.mxu0 0.0
        %1181 = vmatprep.subr.mxu0 0.0
        %1182 = vmatpush2.msra.mxu0 0.0
        %1183 = vmatprep.subr.mxu0 0.0
        %1184 = vmatpush2.msra.mxu0 0.0
        %1185 = vmatprep.subr.mxu0 0.0
        %1186 = vmatpush2.msra.mxu0 0.0
        %1187 = vmatprep.subr.mxu0 0.0
        %1188 = vmatpush2.msra.mxu0 0.0
        %1189 = vmatprep.subr.mxu0 0.0
        %1190 = vmatpush2.msra.mxu0 0.0
        %1191 = vmatprep.subr.mxu0 0.0
        %1192 = vmatpush2.msra.mxu0 0.0
        %1193 = vmatprep.subr.mxu0 0.0
        %1194 = vmatpush2.msra.mxu0 0.0
        %1195 = vmatprep.subr.mxu0 0.0
        %1196 = vmatpush2.msra.mxu0 0.0
        %1197 = vmatprep.subr.mxu0 0.0
        %1198 = vmatpush2.msra.mxu0 0.0
        %1199 = vmatprep.subr.mxu0 0.0
        %1200 = vmatpush2.msra.mxu0 0.0
        %1201 = vmatprep.subr.mxu0 0.0
        %1202 = vmatpush2.msra.mxu0 0.0
        %1203 = vmatprep.subr.mxu0 0.0
        %1204 = vmatpush2.msra.mxu0 0.0
        %1205 = vmatprep.subr.mxu0 0.0
        %1206 = vmatpush2.msra.mxu0 0.0
        %1207 = vmatprep.mubr.f32.mxu0 0.0
        %v1208 = vand.u32 %v838, 4294901760
        %1209 = vmatmul.mubr.f32.gmra.mxu0 %v1208
        %v1210 = vpop.f32.mrf.mxu0
        %v1211 = vadd.f32 %v1137, %v1210
        %v1212 = vpop.f32.mrf.mxu0
        %1213 = vdwg.mxu0
        %1214 = vmatprep.subr.mxu0 0.0
        %1215 = vmatpush1.msra.mxu0 0.0
        %1216 = vmatprep.subr.mxu0 0.0
        %1217 = vmatpush1.msra.mxu0 0.0
        %1218 = vmatprep.subr.mxu0 0.0
        %1219 = vmatpush1.msra.mxu0 0.0
        %1220 = vmatprep.subr.mxu0 0.0
        %1221 = vmatpush1.msra.mxu0 0.0
        %1222 = vmatprep.subr.mxu0 0.0
        %1223 = vmatpush1.msra.mxu0 0.0
        %1224 = vmatprep.subr.mxu0 0.0
        %1225 = vmatpush1.msra.mxu0 0.0
        %1226 = vmatprep.subr.mxu0 0.0
        %1227 = vmatpush1.msra.mxu0 0.0
        %1228 = vmatprep.subr.mxu0 0.0
        %1229 = vmatpush1.msra.mxu0 0.0
        %1230 = vmatprep.subr.mxu0 0.0
        %1231 = vmatpush1.msra.mxu0 0.0
        %1232 = vmatprep.subr.mxu0 0.0
        %1233 = vmatpush1.msra.mxu0 0.0
        %1234 = vmatprep.subr.mxu0 0.0
        %1235 = vmatpush1.msra.mxu0 0.0
        %1236 = vmatprep.subr.mxu0 0.0
        %1237 = vmatpush1.msra.mxu0 0.0
        %1238 = vmatprep.subr.mxu0 0.0
        %1239 = vmatpush1.msra.mxu0 0.0
        %1240 = vmatprep.subr.mxu0 0.0
        %1241 = vmatpush1.msra.mxu0 0.0
        %1242 = vmatprep.subr.mxu0 0.0
        %1243 = vmatpush1.msra.mxu0 0.0
        %1244 = vmatprep.subr.mxu0 0.0
        %v1245 = vand.u32 %v331, 4294901760
        %1246 = vmatpush1.msra.mxu0 %v1245
        %1247 = vmatprep.subr.mxu0 0.0
        %1248 = vmatpush2.msra.mxu0 0.0
        %1249 = vmatprep.subr.mxu0 0.0
        %1250 = vmatpush2.msra.mxu0 0.0
        %1251 = vmatprep.subr.mxu0 0.0
        %1252 = vmatpush2.msra.mxu0 0.0
        %1253 = vmatprep.subr.mxu0 0.0
        %1254 = vmatpush2.msra.mxu0 0.0
        %1255 = vmatprep.subr.mxu0 0.0
        %1256 = vmatpush2.msra.mxu0 0.0
        %1257 = vmatprep.subr.mxu0 0.0
        %1258 = vmatpush2.msra.mxu0 0.0
        %1259 = vmatprep.subr.mxu0 0.0
        %1260 = vmatpush2.msra.mxu0 0.0
        %1261 = vmatprep.subr.mxu0 0.0
        %1262 = vmatpush2.msra.mxu0 0.0
        %1263 = vmatprep.subr.mxu0 0.0
        %1264 = vmatpush2.msra.mxu0 0.0
        %1265 = vmatprep.subr.mxu0 0.0
        %1266 = vmatpush2.msra.mxu0 0.0
        %1267 = vmatprep.subr.mxu0 0.0
        %1268 = vmatpush2.msra.mxu0 0.0
        %1269 = vmatprep.subr.mxu0 0.0
        %1270 = vmatpush2.msra.mxu0 0.0
        %1271 = vmatprep.subr.mxu0 0.0
        %1272 = vmatpush2.msra.mxu0 0.0
        %1273 = vmatprep.subr.mxu0 0.0
        %1274 = vmatpush2.msra.mxu0 0.0
        %1275 = vmatprep.subr.mxu0 0.0
        %1276 = vmatpush2.msra.mxu0 0.0
        %1277 = vmatprep.subr.mxu0 0.0
        %1278 = vmatpush2.msra.mxu0 0.0
        %1279 = vmatprep.mubr.f32.mxu0 0.0
        %v1280 = vand.u32 %v838, 4294901760
        %1281 = vmatmul.mubr.f32.gmra.mxu0 %v1280
        %v1282 = vpop.f32.mrf.mxu0
        %v1283 = vadd.f32 %v1211, %v1282
        %v1284 = vpop.f32.mrf.mxu0
        %1285 = vdwg.mxu0
        %v1286 = vrcp.pop %v836
        %v1287 = vmul.f32 1.0, %v1286
        %v1288 = vmul.f32 %v1283, %v1287
        %1289 = vst.msk [vmem:[%s292] sm:$0xff] %vm333, %v1288
        %v1290 = vmul.f32 %v833, %v1287
        %1291 = vst.msk [vmem:[%s299] sm:$0xff] %vm827, %v1290
        %s1292 = sand.u32 %s153, 1
        %s1293 = scalar_lea.sflag [#allocation3], %s1292
        %s1294 = sand.u32 %s153, 1
        %s1295 = smul.addr %s1294, 8
        %s1296 = scalar_lea.vmem [#allocation2], %s1295
        %s1297 = sand.u32 %s181, 1
        %s1298 = scalar_lea.sflag [#allocation5], %s1297
        %s1299 = sand.u32 %s181, 1
        %s1300 = smul.addr %s1299, 8
        %s1301 = scalar_lea.vmem [#allocation4], %s1300
        // Predicated region
        $region37: #{tpu_custom_call.1} parent=35 // pred_check
          %p1302 = pneg %p163
        $region38: #{tpu_custom_call.1} parent=35 // pred_check_branch
          %1304 = sbr.rel (%p1302) target = $region40
        $region39: #{tpu_custom_call.1} parent=35 // pred_region
          %s1306 = ssub.s32 128, 128
          %1307 = vsyncadd %s1293, %s1306
          %s1308 = sadd.s32 %s28, %s27
          %s1309 = smul.addr %s1308, 128
          %s1310 = scalar_lea.hbm %s4, %s1309
          %s1312 = sshll.u32 %s1296, 4
          %s1313 = int_to_ptr.vmem [resolvable:$true] %s1312
          %1315 = dma.vmem_to_hbm [thread:$0]  %s1313, 128, %s1310, %s1293
        $region40: #{tpu_custom_call.1} parent=35 // pred_fallthru
          _
        // Predicated region
        $region41: #{tpu_custom_call.1} parent=35 // pred_check
          %p1316 = pneg %p191
        $region42: #{tpu_custom_call.1} parent=35 // pred_check_branch
          %1318 = sbr.rel (%p1316) target = $region44
        $region43: #{tpu_custom_call.1} parent=35 // pred_region
          %s1320 = ssub.s32 128, 128
          %1321 = vsyncadd %s1298, %s1320
          %s1322 = sadd.s32 %s28, %s27
          %s1323 = smul.addr %s1322, 128
          %s1324 = scalar_lea.hbm %s5, %s1323
          %s1326 = sshll.u32 %s1301, 4
          %s1327 = int_to_ptr.vmem [resolvable:$true] %s1326
          %1329 = dma.vmem_to_hbm [thread:$0]  %s1327, 128, %s1324, %s1298
        $region44: #{tpu_custom_call.1} parent=35 // pred_fallthru
          _
      $region36: #{tpu_custom_call.1} parent=5 // pred_fallthru
        _
      %p1330 = scmp.le.s32.totalorder 2, %s18
      // Predicated region
      $region45: #{tpu_custom_call.1} parent=5 // pred_check
        %p1331 = pneg %p1330
      $region46: #{tpu_custom_call.1} parent=5 // pred_check_branch
        %1333 = sbr.rel (%p1331) target = $region48
      $region47: #{tpu_custom_call.1} parent=5 // pred_region
        %s1334 = ssub.s32 %s18, 2
        // Predicated region
        $region49: #{tpu_custom_call.1} parent=47 // pred_check
          %p1335 = pneg %p169
        $region50: #{tpu_custom_call.1} parent=47 // pred_check_branch
          %1337 = sbr.rel (%p1335) target = $region52
        $region51: #{tpu_custom_call.1} parent=47 // pred_region
          %s1338 = sand.u32 %s154, 1
          %s1339 = scalar_lea.sflag [#allocation3], %s1338
          %s1340 = sand.u32 %s154, 1
          %s1341 = smul.addr %s1340, 8
          %s1342 = scalar_lea.vmem [#allocation2], %s1341
          %1343 = dma.done %s1339, 128
        $region52: #{tpu_custom_call.1} parent=47 // pred_fallthru
          _
        // Predicated region
        $region53: #{tpu_custom_call.1} parent=47 // pred_check
          %p1344 = pneg %p197
        $region54: #{tpu_custom_call.1} parent=47 // pred_check_branch
          %1346 = sbr.rel (%p1344) target = $region56
        $region55: #{tpu_custom_call.1} parent=47 // pred_region
          %s1347 = sand.u32 %s182, 1
          %s1348 = scalar_lea.sflag [#allocation5], %s1347
          %s1349 = sand.u32 %s182, 1
          %s1350 = smul.addr %s1349, 8
          %s1351 = scalar_lea.vmem [#allocation4], %s1350
          %1352 = dma.done %s1348, 128
        $region56: #{tpu_custom_call.1} parent=47 // pred_fallthru
          _
      $region48: #{tpu_custom_call.1} parent=5 // pred_fallthru
        _
    $region6: #{tpu_custom_call.1} parent=1 // loop_footer
      %s22 = sadd.s32 1, %s18
    $region7: #{tpu_custom_call.1} parent=1 // loop_footer_branch
      %17 = sbr.rel target = $region3
    $region8: #{tpu_custom_call.1} parent=1 // loop_exit
      _
    %1353 = vsyncpa [#allocation3], 1
    %s1354 = scalar_lea.sflag [#allocation3], 1
    %1355 = vsyncpa %s1354, 1
    %1356 = vsyncpa [#allocation5], 1
    %s1357 = scalar_lea.sflag [#allocation5], 1
    %1358 = vsyncpa %s1357, 1

</llo_original>
